<compile_context>
chip_gen: v5e
topology: v5e:2x2
jax: 0.10.0
libtpu: 0.0.40
codegen_flags: <defaults>
</compile_context>

<pallas_src>
import jax
import jax.numpy as jnp
from jax.experimental import pallas as pl
from jax.experimental.pallas import tpu as pltpu

EPS = 1e-5

_MAX_TILE_ROWS = 1024          # diminishing returns beyond ~1K rows per step
_TARGET_BLOCK_BYTES = 4 << 20  # ~4 MiB input blocks already hit the HBM roofline
_MIN_GRID_STEPS = 8            # keep the pipeline busy / both v7x TCs fed


def _sublane_align(dtype) -> int:
    """Rows per packed sublane group: 8 (f32), 16 (bf16/f16), 32 (8-bit)."""
    itemsize = jnp.dtype(dtype).itemsize
    return max(8, 8 * (4 // max(1, itemsize)))


def _round_up(x: int, m: int) -> int:
    return ((x + m - 1) // m) * m


def _default_vmem_limit_bytes() -> int:
    """~3/4 of physical per-core VMEM, capped at 64 MiB (v7x-safe)."""
    try:
        cap = int(getattr(pltpu.get_tpu_info(), "vmem_capacity_bytes"))
    except Exception:
        cap = 64 << 20  # v7x per-TC physical VMEM (most conservative)
    return min((cap * 3) // 4, 64 << 20)


def _choose_tile_rows(rows: int, d: int, dtype) -> int:
    """Sublane-aligned row tile targeting ~4 MiB blocks and >= 8 grid steps."""
    align = _sublane_align(dtype)
    row_bytes = d * jnp.dtype(dtype).itemsize
    # Size by bytes: 2-4 MiB blocks keep per-step overhead < ~5% while staying
    # tiny relative to per-core VMEM (leaves room for deeper buffering).
    t = max(align, (_TARGET_BLOCK_BYTES // max(1, row_bytes)) // align * align)
    t = min(t, _MAX_TILE_ROWS)
    # Never taller than the (aligned) total row count.
    t = min(t, _round_up(rows, align))
    # Guarantee a minimum grid length when rows allow, so DMA-in / compute /
    # DMA-out overlap and "parallel" has steps to shard across TensorCores.
    if rows >= _MIN_GRID_STEPS * align:
        t = min(t, max(align, _round_up(-(-rows // _MIN_GRID_STEPS), align)))
    return max(align, t)


def _layernorm_kernel(x_ref, scale_ref, shift_ref, o_ref):
    # x_ref: (tile_rows, D) block in VMEM; reduce over the last (lane) axis.
    x = x_ref[...].astype(jnp.float32)
    inv_d = jnp.float32(1.0 / x.shape[-1])
    # Two-pass centered variance: numerically safe, and free under the HBM
    # roofline since x is already resident in VMEM.
    mean = jnp.sum(x, axis=-1, keepdims=True) * inv_d
    centered = x - mean
    var = jnp.sum(centered * centered, axis=-1, keepdims=True) * inv_d  # biased
    inv_std = jax.lax.rsqrt(var + EPS)
    scale = scale_ref[...].astype(jnp.float32)
    shift = shift_ref[...].astype(jnp.float32)
    o_ref[...] = (centered * inv_std * scale + shift).astype(o_ref.dtype)


def layernorm_pallas(x, scale, shift, *, tile_rows=None, vmem_limit_bytes=None):
    """x: (..., D) float array; scale/shift: (D,). Normalizes the last axis."""
    orig_shape = x.shape
    d = orig_shape[-1]
    rows = 1
    for s in orig_shape[:-1]:
        rows *= s

    x2 = x.reshape(rows, d)
    scale2 = scale.reshape(1, d)
    shift2 = shift.reshape(1, d)

    if vmem_limit_bytes is None:
        vmem_limit_bytes = _default_vmem_limit_bytes()
    if tile_rows is None:
        tile_rows = _choose_tile_rows(rows, d, x.dtype)
    align = _sublane_align(x.dtype)
    tile_rows = max(align, _round_up(int(tile_rows), align))

    # Ragged rows: cdiv grid, Pallas masks the tail block's out-of-bounds
    # stores (per-row math means the garbage rows it reads are harmless).
    grid = (pl.cdiv(rows, tile_rows),)

    itemsize = jnp.dtype(x.dtype).itemsize
    cost = pl.CostEstimate(
        flops=8 * rows * d,
        transcendentals=rows,
        bytes_accessed=2 * rows * d * itemsize + 2 * d * 4,
    )

    out = pl.pallas_call(
        _layernorm_kernel,
        out_shape=jax.ShapeDtypeStruct((rows, d), x.dtype),
        grid_spec=pltpu.PrefetchScalarGridSpec(
            num_scalar_prefetch=0,
            grid=grid,
            in_specs=[
                pl.BlockSpec((tile_rows, d), lambda i: (i, 0)),
                pl.BlockSpec((1, d), lambda i: (0, 0)),  # resident scale
                pl.BlockSpec((1, d), lambda i: (0, 0)),  # resident shift
            ],
            out_specs=pl.BlockSpec((tile_rows, d), lambda i: (i, 0)),
        ),
        compiler_params=pltpu.CompilerParams(
            dimension_semantics=("parallel",),
            vmem_limit_bytes=int(vmem_limit_bytes),
        ),
        cost_estimate=cost,
    )(x2, scale2, shift2)

    return out.reshape(orig_shape)


def _reference_layernorm(x, scale, shift):
    xf = x.astype(jnp.float32)
    mean = jnp.mean(xf, axis=-1, keepdims=True)
    var = jnp.mean((xf - mean) ** 2, axis=-1, keepdims=True)  # biased (correction=0)
    norm = (xf - mean) / jnp.sqrt(var + EPS)
    return (norm * scale.astype(jnp.float32) + shift.astype(jnp.float32)).astype(x.dtype)


if __name__ == "__main__":
    key = jax.random.PRNGKey(0)
    k1, k2, k3, k4 = jax.random.split(key, 4)

    # Case 1: shapes implied by the module (batch=2, seq=8, embed_dim=32).
    batch, seq, embed_dim = 2, 8, 32
    scale = jnp.ones((embed_dim,), dtype=jnp.float32)   # nn.Parameter(torch.ones)
    shift = jnp.zeros((embed_dim,), dtype=jnp.float32)  # nn.Parameter(torch.zeros)
    x = jax.random.normal(k1, (batch, seq, embed_dim), dtype=jnp.float32)
    out = jax.block_until_ready(layernorm_pallas(x, scale, shift))
    ref = _reference_layernorm(x, scale, shift)
    assert out.shape == x.shape and out.dtype == x.dtype
    assert jnp.allclose(out, ref, atol=1e-4, rtol=1e-4), "mismatch (case 1)"

    # Case 2: ragged row count (rows=15, masked tail block), lane-dense D=128.
    b2, s2, d2 = 3, 5, 128
    scale_b = jax.random.normal(k2, (d2,), dtype=jnp.float32)
    shift_b = jnp.full((d2,), 0.25, dtype=jnp.float32)
    x_b = jax.random.normal(k2, (b2, s2, d2), dtype=jnp.float32) * 2.0 + 1.0
    out_b = jax.block_until_ready(layernorm_pallas(x_b, scale_b, shift_b))
    ref_b = _reference_layernorm(x_b, scale_b, shift_b)
    assert jnp.allclose(out_b, ref_b, atol=1e-4, rtol=1e-4), "mismatch (case 2)"

    # Case 3: multi-step grid with a ragged tail (rows=100 -> several tiles).
    b3, s3, d3 = 4, 25, 128
    scale_c = jax.random.normal(k3, (d3,), dtype=jnp.float32)
    shift_c = jax.random.normal(k3, (d3,), dtype=jnp.float32)
    x_c = jax.random.normal(k3, (b3, s3, d3), dtype=jnp.float32) * 3.0 - 2.0
    out_c = jax.block_until_ready(layernorm_pallas(x_c, scale_c, shift_c))
    ref_c = _reference_layernorm(x_c, scale_c, shift_c)
    assert jnp.allclose(out_c, ref_c, atol=1e-4, rtol=1e-4), "mismatch (case 3)"

    # Case 4: bf16 input (16-row sublane alignment path, f32 accumulation).
    b4, s4, d4 = 2, 16, 128
    scale_d = jnp.ones((d4,), dtype=jnp.bfloat16)
    shift_d = jnp.zeros((d4,), dtype=jnp.bfloat16)
    x_d = jax.random.normal(k4, (b4, s4, d4), dtype=jnp.bfloat16)
    out_d = jax.block_until_ready(layernorm_pallas(x_d, scale_d, shift_d))
    ref_d = _reference_layernorm(x_d, scale_d, shift_d)
    assert out_d.dtype == jnp.bfloat16
    assert jnp.allclose(out_d.astype(jnp.float32), ref_d.astype(jnp.float32),
                        atol=3e-2, rtol=3e-2), "mismatch (case 4)"

    print("KERNEL_OK")
</pallas_src>

<mosaic_0001>
module attributes {stable_mosaic.version = 11 : i64} {
  func.func @_layernorm_kernel(%arg0: i32, %arg1: memref<16x32xf32, #tpu.memory_space<vmem>>, %arg2: memref<1x32xf32, #tpu.memory_space<vmem>>, %arg3: memref<1x32xf32, #tpu.memory_space<vmem>>, %arg4: memref<16x32xf32, #tpu.memory_space<vmem>>) attributes {dimension_semantics = [#tpu.dimension_semantics<parallel>], iteration_bounds = array<i64: 1>, scalar_prefetch = 0 : i64, scratch_operands = 0 : i64, tpu.core_type = #tpu.core_type<tc>, window_params = [{transform_indices = @transform_0, window_bounds = array<i64: 16, 32>}, {pipeline_mode = #tpu.pipeline_mode<synchronous>, transform_indices = @transform_1, window_bounds = array<i64: 1, 32>}, {pipeline_mode = #tpu.pipeline_mode<synchronous>, transform_indices = @transform_2, window_bounds = array<i64: 1, 32>}, {transform_indices = @transform_3, window_bounds = array<i64: 16, 32>}]} {
    %c0 = arith.constant 0 : index
    %c0_0 = arith.constant 0 : index
    %0 = vector.load %arg1[%c0, %c0_0] : memref<16x32xf32, #tpu.memory_space<vmem>>, vector<16x32xf32>
    %cst = arith.constant dense<0.000000e+00> : vector<16xf32>
    %1 = vector.multi_reduction <add>, %0, %cst [1] : vector<16x32xf32> to vector<16xf32>
    %2 = vector.shape_cast %1 : vector<16xf32> to vector<16x1xf32>
    %cst_1 = arith.constant 3.125000e-02 : f32
    %3 = vector.broadcast %cst_1 : f32 to vector<16x1xf32>
    %4 = arith.mulf %2, %3 : vector<16x1xf32>
    %5 = vector.broadcast %4 : vector<16x1xf32> to vector<16x32xf32>
    %6 = arith.subf %0, %5 : vector<16x32xf32>
    %7 = arith.mulf %6, %6 : vector<16x32xf32>
    %cst_2 = arith.constant dense<0.000000e+00> : vector<16xf32>
    %8 = vector.multi_reduction <add>, %7, %cst_2 [1] : vector<16x32xf32> to vector<16xf32>
    %9 = vector.shape_cast %8 : vector<16xf32> to vector<16x1xf32>
    %cst_3 = arith.constant 3.125000e-02 : f32
    %10 = vector.broadcast %cst_3 : f32 to vector<16x1xf32>
    %11 = arith.mulf %9, %10 : vector<16x1xf32>
    %cst_4 = arith.constant 9.99999974E-6 : f32
    %12 = vector.broadcast %cst_4 : f32 to vector<16x1xf32>
    %13 = arith.addf %11, %12 : vector<16x1xf32>
    %14 = math.rsqrt %13 : vector<16x1xf32>
    %c0_5 = arith.constant 0 : index
    %c0_6 = arith.constant 0 : index
    %15 = vector.load %arg2[%c0_5, %c0_6] : memref<1x32xf32, #tpu.memory_space<vmem>>, vector<1x32xf32>
    %c0_7 = arith.constant 0 : index
    %c0_8 = arith.constant 0 : index
    %16 = vector.load %arg3[%c0_7, %c0_8] : memref<1x32xf32, #tpu.memory_space<vmem>>, vector<1x32xf32>
    %17 = vector.broadcast %14 : vector<16x1xf32> to vector<16x32xf32>
    %18 = arith.mulf %6, %17 : vector<16x32xf32>
    %19 = vector.broadcast %15 : vector<1x32xf32> to vector<16x32xf32>
    %20 = arith.mulf %18, %19 : vector<16x32xf32>
    %21 = vector.broadcast %16 : vector<1x32xf32> to vector<16x32xf32>
    %22 = arith.addf %20, %21 : vector<16x32xf32>
    %c0_9 = arith.constant 0 : index
    %c0_10 = arith.constant 0 : index
    %23 = vector.load %arg4[%c0_9, %c0_10] : memref<16x32xf32, #tpu.memory_space<vmem>>, vector<16x32xf32>
    tpu.vector_store %arg4[%c0_9, %c0_10], %22 {strides = array<i32>} : memref<16x32xf32, #tpu.memory_space<vmem>>, vector<16x32xf32>,
    return
  }
  func.func @transform_0(%arg0: i32) -> (i32, i32) {
    %c0_i32 = arith.constant 0 : i32
    %c0_i32_0 = arith.constant 0 : i32
    return %arg0, %c0_i32 : i32, i32
  }
  func.func @transform_1(%arg0: i32) -> (i32, i32) {
    %c0_i32 = arith.constant 0 : i32
    %c0_i32_0 = arith.constant 0 : i32
    %c0_i32_1 = arith.constant 0 : i32
    return %c0_i32, %c0_i32_0 : i32, i32
  }
  func.func @transform_2(%arg0: i32) -> (i32, i32) {
    %c0_i32 = arith.constant 0 : i32
    %c0_i32_0 = arith.constant 0 : i32
    %c0_i32_1 = arith.constant 0 : i32
    return %c0_i32, %c0_i32_0 : i32, i32
  }
  func.func @transform_3(%arg0: i32) -> (i32, i32) {
    %c0_i32 = arith.constant 0 : i32
    %c0_i32_0 = arith.constant 0 : i32
    return %arg0, %c0_i32 : i32, i32
  }
}

</mosaic_0001>

<llo_original>
// kernel: tpu_custom_call.1
$region0: #{tpu_custom_call.1}
  #allocation0 [shape = 'u32[]', space=smem, size = 0x4, offset = 0x4, fixed_abs, tag = 'smem constant byte address 0x4 - core index']
  #allocation1 [shape = 'u32[72,128]{1,0:T(1,128)}', space=vmem, size = 0x9000, scoped, tag = 'internal scratch']
  %s0 = inlined_call_operand.hbm [shape: f32[16,32], index: 0, kind: input, shape index: {}]
  %s1 = inlined_call_operand.hbm [shape: f32[1,32], index: 1, kind: input, shape index: {}]
  %s2 = inlined_call_operand.vmem [shape: f32[1,32], index: 2, kind: input, shape index: {}]
  %s3 = inlined_call_operand.hbm [shape: f32[16,32], index: 3, kind: output, shape index: {}]
  %s4 = sld [smem:[#allocation0]]
  $region30: #{tpu_custom_call.1} parent=0
    _
  %s6 = ssub.s32 1, %s4
  %s7 = scalar_select 0, %s6, %s4
  $region1: #{tpu_custom_call.1} parent=0
    #allocation2 [shape = 'u8[8192]{0}', space=vmem, size = 0x2000, scoped, tag = 'input window, operand 0, single buffered']
    #allocation3 [shape = 's32[1]{0}', space=sflag, size = 0x4, scoped, tag = 'scoped memory for tpu_custom_call.1']
    #allocation4 [shape = 's32[1]{0}', space=sflag, size = 0x4, scoped, tag = 'scoped memory for tpu_custom_call.1']
    #allocation5 [shape = 'u8[512]{0}', space=vmem, size = 0x400, scoped, tag = 'input window, operand 1, single buffered']
    #allocation6 [shape = 's32[1]{0}', space=sflag, size = 0x4, scoped, tag = 'scoped memory for tpu_custom_call.1']
    #allocation7 [shape = 'u8[8192]{0}', space=vmem, size = 0x2000, scoped, tag = 'output window, operand 0, single buffered']
    %8 = vsyncpa [#allocation3], 0
    %9 = vsyncpa [#allocation6], 0
    %10 = vsyncpa [#allocation4], 0
    // Predicated region
    $region2: #{tpu_custom_call.1} parent=1 // pred_check
      _
    $region3: #{tpu_custom_call.1} parent=1 // pred_check_branch
      %12 = sbr.rel (0) target = $region5
    $region4: #{tpu_custom_call.1} parent=1 // pred_region
      %14 = vsyncadd [#allocation3], 0
      %s15 = sshll.u32 %s0, 4
      %s16 = int_to_ptr.hbm [resolvable:$true] %s15
      %s17 = sshll.u32 [#allocation2], 4
      %s18 = int_to_ptr.vmem [resolvable:$true] %s17
      %23 = dma.hbm_to_vmem [thread:$0]  %s16, 256, %s18, [#allocation3], 128, 128, 8
    $region5: #{tpu_custom_call.1} parent=1 // pred_fallthru
      _
    // Predicated region
    $region6: #{tpu_custom_call.1} parent=1 // pred_check
      _
    $region7: #{tpu_custom_call.1} parent=1 // pred_check_branch
      %25 = sbr.rel (0) target = $region9
    $region8: #{tpu_custom_call.1} parent=1 // pred_region
      %27 = vsyncadd [#allocation6], 0
      %s29 = sshll.u32 %s1, 4
      %s30 = int_to_ptr.hbm [resolvable:$true] %s29
      %s31 = sshll.u32 [#allocation5], 4
      %s32 = int_to_ptr.vmem [resolvable:$true] %s31
      %34 = dma.hbm_to_vmem [thread:$0]  %s30, 16, %s32, [#allocation6]
    $region9: #{tpu_custom_call.1} parent=1 // pred_fallthru
      _
    // Predicated region
    $region10: #{tpu_custom_call.1} parent=1 // pred_check
      _
    $region11: #{tpu_custom_call.1} parent=1 // pred_check_branch
      %36 = sbr.rel (0) target = $region13
    $region12: #{tpu_custom_call.1} parent=1 // pred_region
      _
    $region13: #{tpu_custom_call.1} parent=1 // pred_fallthru
      _
    // Predicated region
    $region14: #{tpu_custom_call.1} parent=1 // pred_check
      _
    $region15: #{tpu_custom_call.1} parent=1 // pred_check_branch
      %38 = sbr.rel (0) target = $region17
    $region16: #{tpu_custom_call.1} parent=1 // pred_region
      %40 = dma.done [#allocation3], 256
    $region17: #{tpu_custom_call.1} parent=1 // pred_fallthru
      _
    // Predicated region
    $region18: #{tpu_custom_call.1} parent=1 // pred_check
      _
    $region19: #{tpu_custom_call.1} parent=1 // pred_check_branch
      %42 = sbr.rel (0) target = $region21
    $region20: #{tpu_custom_call.1} parent=1 // pred_region
      %44 = dma.done [#allocation6], 16
    $region21: #{tpu_custom_call.1} parent=1 // pred_fallthru
      _
    %v45 = vld [vmem:[#allocation2] sm:$0xff]
    %v46 = vld [vmem:[#allocation2 + $0x8] sm:$0xff]
    %vm47 = vcmask 261120
    %v48 = vsel %vm47, %v45, 0.0
    %49 = vadd.xlane.f32.xlu0 %v48
    %v50 = vpop.xlane.xlu0 %49
    %v51 = vsel %vm47, %v46, 0.0
    %52 = vadd.xlane.f32.xlu0 %v51
    %v53 = vpop.xlane.xlu0 %52
    %v54 = vmul.f32 %v50, 0.03125
    %v55 = vmul.f32 %v53, 0.03125
    %v56 = vsub.f32 %v45, %v54
    %v57 = vsub.f32 %v46, %v55
    %v58 = vmul.f32 %v56, %v56
    %v59 = vmul.f32 %v57, %v57
    %v60 = vsel %vm47, %v58, 0.0
    %61 = vadd.xlane.f32.xlu0 %v60
    %v62 = vpop.xlane.xlu0 %61
    %v63 = vsel %vm47, %v59, 0.0
    %64 = vadd.xlane.f32.xlu0 %v63
    %v65 = vpop.xlane.xlu0 %64
    %v66 = vmul.f32 %v62, 0.03125
    %v67 = vmul.f32 %v65, 0.03125
    %v68 = vadd.f32 %v66, 1e-05
    %v69 = vadd.f32 %v67, 1e-05
    %v70 = vrsqrt.pop %v68
    %v71 = vmul.f32 %v70, %v68
    %v72 = vmul.f32 %v71, %v70
    %v73 = vmul.f32 0.5, %v72
    %v74 = vsub.f32 1.5, %v73
    %v75 = vmul.f32 %v70, %v74
    %vm76 = vweird.f32 %v68
    %vm77 = vweird.f32 %v70
    %vm78 = vmor %vm76, %vm77
    %v79 = vsel %vm78, %v70, %v75
    %v80 = vrsqrt.pop %v69
    %v81 = vmul.f32 %v80, %v69
    %v82 = vmul.f32 %v81, %v80
    %v83 = vmul.f32 0.5, %v82
    %v84 = vsub.f32 1.5, %v83
    %v85 = vmul.f32 %v80, %v84
    %vm86 = vweird.f32 %v69
    %vm87 = vweird.f32 %v80
    %vm88 = vmor %vm86, %vm87
    %v89 = vsel %vm88, %v80, %v85
    %v90 = vld [vmem:[#allocation5] sm:$0x1]
    %v91 = vld [vmem:[%s2] sm:$0x1]
    %v92 = vmul.f32 %v56, %v79
    %v93 = vmul.f32 %v57, %v89
    %v95 = vperm.slane %v90, 0
    %v97 = vmul.f32 %v92, %v95
    %v98 = vmul.f32 %v93, %v95
    %v100 = vperm.slane %v91, 0
    %v102 = vadd.f32 %v97, %v100
    %v103 = vadd.f32 %v98, %v100
    %104 = vst.msk [vmem:[#allocation7] sm:$0xff] %vm47, %v102
    %105 = vst.msk [vmem:[#allocation7 + $0x8] sm:$0xff] %vm47, %v103
    // Predicated region
    $region22: #{tpu_custom_call.1} parent=1 // pred_check
      _
    $region23: #{tpu_custom_call.1} parent=1 // pred_check_branch
      %107 = sbr.rel (0) target = $region25
    $region24: #{tpu_custom_call.1} parent=1 // pred_region
      %109 = vsyncadd [#allocation4], 0
      %s110 = sshll.u32 [#allocation7], 4
      %s111 = int_to_ptr.vmem [resolvable:$true] %s110
      %s112 = sshll.u32 %s3, 4
      %s113 = int_to_ptr.hbm [resolvable:$true] %s112
      %118 = dma.vmem_to_hbm [thread:$0]  %s111, 256, %s113, [#allocation4], 128, 128, 8
    $region25: #{tpu_custom_call.1} parent=1 // pred_fallthru
      _
    // Predicated region
    $region26: #{tpu_custom_call.1} parent=1 // pred_check
      _
    $region27: #{tpu_custom_call.1} parent=1 // pred_check_branch
      %120 = sbr.rel (0) target = $region29
    $region28: #{tpu_custom_call.1} parent=1 // pred_region
      %122 = dma.done [#allocation4], 256
    $region29: #{tpu_custom_call.1} parent=1 // pred_fallthru
      _
    %123 = vsyncpa [#allocation3], 1
    %124 = vsyncpa [#allocation6], 1
    %125 = vsyncpa [#allocation4], 1

</llo_original>
